<compile_context>
chip_gen: v7x
topology: tpu7x:2x2x1
jax: 0.10.0
libtpu: 0.0.40
codegen_flags: <defaults>
</compile_context>

<pallas_src>
import jax
import jax.numpy as jnp
import numpy as np
from jax import lax
from jax.experimental import pallas as pl
from jax.experimental.pallas import tpu as pltpu

PERCENTILES = (0.25, 0.5, 0.75)


def _make_kernel(batch, block_rows, nbins, approx_recip):
    B, TB, N = batch, block_rows, nbins
    needs_row_mask = (B % TB) != 0

    def kernel(p_est_ref, p_tgt_ref, out_ref, cums_ref):
        pid = pl.program_id(0)

        # ---- once per launch: zero the accumulator, build the NxN
        #      lower-triangular ones matrix for the cumsum matmul. ----------
        @pl.when(pid == 0)
        def _():
            out_ref[...] = jnp.zeros_like(out_ref)
            k_idx = lax.broadcasted_iota(jnp.int32, (N, N), 0)
            j_idx = lax.broadcasted_iota(jnp.int32, (N, N), 1)
            cums_ref[...] = (k_idx <= j_idx).astype(jnp.float32)

        p_est = p_est_ref[...].astype(jnp.float32)
        p_tgt = p_tgt_ref[...].astype(jnp.float32)

        if needs_row_mask:
            # Rows past the true batch (partial last tile) are replaced by a
            # uniform distribution for BOTH inputs, so their target/estimate
            # quantiles are bit-identical and contribute exactly 0 loss.  This
            # also sanitizes any stale/garbage data in the padded block rows.
            rows = pid * TB + lax.broadcasted_iota(jnp.int32, (TB, N), 0)
            valid = rows < B
            p_est = jnp.where(valid, p_est, 1.0 / N)
            p_tgt = jnp.where(valid, p_tgt, 1.0 / N)

        lane = lax.broadcasted_iota(jnp.int32, (TB, N), 1)
        is_first_bin = lane == 0
        xb = (lane + 1).astype(jnp.float32)            # x[i] = i + 1

        cums_mat = cums_ref[...]

        def prep(p):
            # Inclusive CDF via one small MXU matmul (MXU otherwise idle).
            cdf = jnp.dot(p, cums_mat, preferred_element_type=jnp.float32)
            # prev[:, i] = cdf[:, i-1] == cdf[:, i] - p[:, i]; the first bin is
            # gated with -1 so its test reduces to "percentile <= cdf[0]".
            prev = jnp.where(is_first_bin, -1.0, cdf - p)
            # Interpolation slope A = cdf[i] - cdf[i-1] = p[i].  Zero-mass bins
            # can never be selected (their (prev, cdf] interval is empty), so
            # the 1.0 placeholder never reaches the output.
            inv_mass = pl.reciprocal(jnp.where(p > 0.0, p, 1.0),
                                     approx=approx_recip)
            return cdf, prev, inv_mass

        cdf_t, prev_t, inv_t = prep(p_tgt)
        cdf_e, prev_e, inv_e = prep(p_est)

        # For the bin i containing percentile pk:
        #   score = x[i] + (pk - cdf[i]) / (cdf[i] - cdf[i-1])
        # The intervals (prev, cdf] are disjoint, so exactly one lane matches;
        # a masked lane-sum recovers the selected value (no argmin / one-hot),
        # and target/estimate share one reduce since the sum is linear.
        abs_acc = jnp.zeros((TB, 1), jnp.float32)
        for pk in PERCENTILES:
            sel_t = (pk <= cdf_t) & (pk > prev_t)
            sel_e = (pk <= cdf_e) & (pk > prev_e)
            val_t = xb + (pk - cdf_t) * inv_t
            val_e = xb + (pk - cdf_e) * inv_e
            diff = jnp.where(sel_t, val_t, 0.0) - jnp.where(sel_e, val_e, 0.0)
            qdiff = jnp.sum(diff, axis=1, keepdims=True)      # (TB, 1)
            abs_acc = abs_acc + jnp.abs(qdiff)
            # TODO(synk): if a percentile exceeds cdf[-1] (unnormalized input)
            # no lane matches and this contributes 0, whereas the PyTorch code
            # silently reuses a stale score from a previous iteration.

        # One sublane reduce per tile, accumulated into the resident block.
        out_ref[...] += jnp.sum(abs_acc, axis=0, keepdims=True)

    return kernel


def mquantile_loss(p_estimate, p_target, *, block_rows=1024, approx_recip=True):
    B, N = p_estimate.shape
    assert p_target.shape == (B, N)

    if B <= block_rows:
        tb = B                                  # single tile covers the batch
    else:
        tb = max(8, (block_rows // 8) * 8)      # f32 sublane multiple
    num_blocks = pl.cdiv(B, tb)

    kernel = _make_kernel(B, tb, N, approx_recip)
    bytes_in = int(p_estimate.size * p_estimate.dtype.itemsize
                   + p_target.size * p_target.dtype.itemsize)

    total = pl.pallas_call(
        kernel,
        out_shape=jax.ShapeDtypeStruct((1, 1), jnp.float32),
        grid_spec=pltpu.PrefetchScalarGridSpec(
            num_scalar_prefetch=0,
            grid=(num_blocks,),
            in_specs=[
                pl.BlockSpec((tb, N), lambda i: (i, 0)),
                pl.BlockSpec((tb, N), lambda i: (i, 0)),
            ],
            out_specs=pl.BlockSpec((1, 1), lambda i: (0, 0)),
            scratch_shapes=[pltpu.VMEM((N, N), jnp.float32)],
        ),
        compiler_params=pltpu.CompilerParams(
            # Output block is revisited every step (accumulator) -> serial axis.
            dimension_semantics=("arbitrary",),
            vmem_limit_bytes=32 * 1024 * 1024,
        ),
        cost_estimate=pl.CostEstimate(
            flops=int(2 * B * N * N + 80 * B * N),
            transcendentals=int(2 * B * N),
            bytes_accessed=bytes_in + 4,
        ),
    )(p_estimate, p_target)

    return total[0, 0] / (float(len(PERCENTILES)) * float(B))


def _reference_loss(p_est, p_tgt):
    """Literal NumPy (float64) port of the PyTorch forward, for verification."""
    pe, pt = np.asarray(p_est, np.float64), np.asarray(p_tgt, np.float64)
    B, N = pe.shape
    x = np.arange(1, N + 1)
    percentiles = list(PERCENTILES)

    def quan(cdf):
        q = np.zeros((B, len(percentiles)))
        for b in range(B):
            t = cdf[b]
            for k, p in enumerate(percentiles):
                score = 0.0
                for i in range(N):
                    if p <= t[0]:
                        Xa, Xb, Ya, Yb = 0.0, x[i], 0.0, t[i]
                    elif p <= t[i] and p > t[i - 1]:
                        Xa, Xb, Ya, Yb = x[i - 1], x[i], t[i - 1], t[i]
                    else:
                        continue
                    A = (Yb - Ya) / (Xb - Xa)
                    Bc = Yb - A * Xb
                    score = (p - Bc) / A
                    break
                q[b, k] = score
        return q

    q1 = quan(np.cumsum(pt, axis=1))
    q2 = quan(np.cumsum(pe, axis=1))
    return np.abs(q1 - q2).mean()


if __name__ == "__main__":
    key = jax.random.PRNGKey(0)
    k1, k2, k3, k4 = jax.random.split(key, 4)

    # --- case 1: single-tile path, exact reciprocal, tight tolerance --------
    B, N = 8, 16
    p_estimate = jax.nn.softmax(jax.random.normal(k1, (B, N), jnp.float32), axis=1)
    p_target = jax.nn.softmax(jax.random.normal(k2, (B, N), jnp.float32), axis=1)

    loss_exact = mquantile_loss(p_estimate, p_target, approx_recip=False)
    jax.block_until_ready(loss_exact)
    ref = _reference_loss(p_estimate, p_target)
    assert np.allclose(float(loss_exact), ref, atol=1e-4), (float(loss_exact), ref)

    # --- case 2: default fast path (EUP approximate reciprocal) -------------
    loss_fast = mquantile_loss(p_estimate, p_target)
    jax.block_until_ready(loss_fast)
    assert np.allclose(float(loss_fast), ref, atol=1e-2), (float(loss_fast), ref)

    # --- case 3: multi-tile grid with a partial (masked) last tile ----------
    B2 = 37
    p_est2 = jax.nn.softmax(jax.random.normal(k3, (B2, N), jnp.float32), axis=1)
    p_tgt2 = jax.nn.softmax(jax.random.normal(k4, (B2, N), jnp.float32), axis=1)
    loss_tiled = mquantile_loss(p_est2, p_tgt2, block_rows=16)
    jax.block_until_ready(loss_tiled)
    ref2 = _reference_loss(p_est2, p_tgt2)
    assert np.allclose(float(loss_tiled), ref2, atol=1e-2), (float(loss_tiled), ref2)

    print("KERNEL_OK")
</pallas_src>

<mosaic_0001>
module attributes {stable_mosaic.version = 11 : i64} {
  func.func @kernel(%arg0: i32, %arg1: memref<8x16xf32, #tpu.memory_space<vmem>>, %arg2: memref<8x16xf32, #tpu.memory_space<vmem>>, %arg3: memref<1x1xf32, #tpu.memory_space<vmem>>, %arg4: memref<16x16xf32, #tpu.memory_space<vmem>>) attributes {dimension_semantics = [#tpu.dimension_semantics<arbitrary>], iteration_bounds = array<i64: 1>, scalar_prefetch = 0 : i64, scratch_operands = 1 : i64, tpu.core_type = #tpu.core_type<tc>, window_params = [{transform_indices = @transform_0, window_bounds = array<i64: 8, 16>}, {transform_indices = @transform_1, window_bounds = array<i64: 8, 16>}, {pipeline_mode = #tpu.pipeline_mode<synchronous>, transform_indices = @transform_2, window_bounds = array<i64: 1, 1>}]} {
    %c0_i32 = arith.constant 0 : i32
    %0 = arith.cmpi eq, %arg0, %c0_i32 : i32
    %1 = arith.extui %0 : i1 to i32
    %c0_i32_0 = arith.constant 0 : i32
    %2 = arith.cmpi ne, %1, %c0_i32_0 : i32
    scf.if %2 {
      %cst_47 = arith.constant 0.000000e+00 : f32
      %117 = vector.broadcast %cst_47 : f32 to vector<1x1xf32>
      %c0_48 = arith.constant 0 : index
      %c0_49 = arith.constant 0 : index
      %118 = vector.load %arg3[%c0_48, %c0_49] : memref<1x1xf32, #tpu.memory_space<vmem>>, vector<1x1xf32>
      tpu.vector_store %arg3[%c0_48, %c0_49], %117 {strides = array<i32>} : memref<1x1xf32, #tpu.memory_space<vmem>>, vector<1x1xf32>,
      %119 = tpu.iota {dimensions = array<i32: 0>} : vector<16x16xi32>
      %120 = tpu.iota {dimensions = array<i32: 1>} : vector<16x16xi32>
      %121 = arith.cmpi sle, %119, %120 : vector<16x16xi32>
      %122 = arith.extui %121 : vector<16x16xi1> to vector<16x16xi32>
      %123 = arith.sitofp %122 : vector<16x16xi32> to vector<16x16xf32>
      %c0_50 = arith.constant 0 : index
      %c0_51 = arith.constant 0 : index
      %124 = vector.load %arg4[%c0_50, %c0_51] : memref<16x16xf32, #tpu.memory_space<vmem>>, vector<16x16xf32>
      tpu.vector_store %arg4[%c0_50, %c0_51], %123 {strides = array<i32>} : memref<16x16xf32, #tpu.memory_space<vmem>>, vector<16x16xf32>,
    } else {
    }
    %c0 = arith.constant 0 : index
    %c0_1 = arith.constant 0 : index
    %3 = vector.load %arg1[%c0, %c0_1] : memref<8x16xf32, #tpu.memory_space<vmem>>, vector<8x16xf32>
    %c0_2 = arith.constant 0 : index
    %c0_3 = arith.constant 0 : index
    %4 = vector.load %arg2[%c0_2, %c0_3] : memref<8x16xf32, #tpu.memory_space<vmem>>, vector<8x16xf32>
    %5 = tpu.iota {dimensions = array<i32: 1>} : vector<8x16xi32>
    %c0_i32_4 = arith.constant 0 : i32
    %6 = vector.broadcast %c0_i32_4 : i32 to vector<8x16xi32>
    %7 = arith.cmpi eq, %5, %6 : vector<8x16xi32>
    %c1_i32 = arith.constant 1 : i32
    %8 = vector.broadcast %c1_i32 : i32 to vector<8x16xi32>
    %9 = arith.addi %5, %8 : vector<8x16xi32>
    %10 = arith.sitofp %9 : vector<8x16xi32> to vector<8x16xf32>
    %c0_5 = arith.constant 0 : index
    %c0_6 = arith.constant 0 : index
    %11 = vector.load %arg4[%c0_5, %c0_6] : memref<16x16xf32, #tpu.memory_space<vmem>>, vector<16x16xf32>
    %cst = arith.constant dense<0.000000e+00> : vector<8x16xf32>
    %12 = tpu.matmul %4, %11, %cst {dimension_numbers = #tpu.dot_dimension_numbers<[1], [0], [0], [1], [0, 0, 1, 1], [], []>} : vector<8x16xf32>, vector<16x16xf32>, vector<8x16xf32> -> vector<8x16xf32>
    %13 = arith.subf %12, %4 : vector<8x16xf32>
    %cst_7 = arith.constant -1.000000e+00 : f32
    %14 = vector.broadcast %cst_7 : f32 to vector<8x16xf32>
    %15 = arith.select %7, %14, %13 : vector<8x16xi1>, vector<8x16xf32>
    %cst_8 = arith.constant 0.000000e+00 : f32
    %16 = vector.broadcast %cst_8 : f32 to vector<8x16xf32>
    %17 = arith.cmpf ogt, %4, %16 : vector<8x16xf32>
    %cst_9 = arith.constant 1.000000e+00 : f32
    %18 = vector.broadcast %cst_9 : f32 to vector<8x16xf32>
    %19 = arith.select %17, %4, %18 : vector<8x16xi1>, vector<8x16xf32>
    %20 = tpu.reciprocal %19 : vector<8x16xf32> -> vector<8x16xf32>
    %cst_10 = arith.constant dense<0.000000e+00> : vector<8x16xf32>
    %21 = tpu.matmul %3, %11, %cst_10 {dimension_numbers = #tpu.dot_dimension_numbers<[1], [0], [0], [1], [0, 0, 1, 1], [], []>} : vector<8x16xf32>, vector<16x16xf32>, vector<8x16xf32> -> vector<8x16xf32>
    %22 = arith.subf %21, %3 : vector<8x16xf32>
    %cst_11 = arith.constant -1.000000e+00 : f32
    %23 = vector.broadcast %cst_11 : f32 to vector<8x16xf32>
    %24 = arith.select %7, %23, %22 : vector<8x16xi1>, vector<8x16xf32>
    %cst_12 = arith.constant 0.000000e+00 : f32
    %25 = vector.broadcast %cst_12 : f32 to vector<8x16xf32>
    %26 = arith.cmpf ogt, %3, %25 : vector<8x16xf32>
    %cst_13 = arith.constant 1.000000e+00 : f32
    %27 = vector.broadcast %cst_13 : f32 to vector<8x16xf32>
    %28 = arith.select %26, %3, %27 : vector<8x16xi1>, vector<8x16xf32>
    %29 = tpu.reciprocal %28 : vector<8x16xf32> -> vector<8x16xf32>
    %cst_14 = arith.constant 0.000000e+00 : f32
    %30 = vector.broadcast %cst_14 : f32 to vector<8x1xf32>
    %cst_15 = arith.constant 2.500000e-01 : f32
    %31 = vector.broadcast %cst_15 : f32 to vector<8x16xf32>
    %32 = arith.cmpf oge, %12, %31 : vector<8x16xf32>
    %cst_16 = arith.constant 2.500000e-01 : f32
    %33 = vector.broadcast %cst_16 : f32 to vector<8x16xf32>
    %34 = arith.cmpf olt, %15, %33 : vector<8x16xf32>
    %35 = arith.andi %32, %34 : vector<8x16xi1>
    %cst_17 = arith.constant 2.500000e-01 : f32
    %36 = vector.broadcast %cst_17 : f32 to vector<8x16xf32>
    %37 = arith.cmpf oge, %21, %36 : vector<8x16xf32>
    %cst_18 = arith.constant 2.500000e-01 : f32
    %38 = vector.broadcast %cst_18 : f32 to vector<8x16xf32>
    %39 = arith.cmpf olt, %24, %38 : vector<8x16xf32>
    %40 = arith.andi %37, %39 : vector<8x16xi1>
    %cst_19 = arith.constant 2.500000e-01 : f32
    %41 = vector.broadcast %cst_19 : f32 to vector<8x16xf32>
    %42 = arith.subf %41, %12 : vector<8x16xf32>
    %43 = arith.mulf %42, %20 : vector<8x16xf32>
    %44 = arith.addf %10, %43 : vector<8x16xf32>
    %cst_20 = arith.constant 2.500000e-01 : f32
    %45 = vector.broadcast %cst_20 : f32 to vector<8x16xf32>
    %46 = arith.subf %45, %21 : vector<8x16xf32>
    %47 = arith.mulf %46, %29 : vector<8x16xf32>
    %48 = arith.addf %10, %47 : vector<8x16xf32>
    %cst_21 = arith.constant 0.000000e+00 : f32
    %49 = vector.broadcast %cst_21 : f32 to vector<8x16xf32>
    %50 = arith.select %35, %44, %49 : vector<8x16xi1>, vector<8x16xf32>
    %cst_22 = arith.constant 0.000000e+00 : f32
    %51 = vector.broadcast %cst_22 : f32 to vector<8x16xf32>
    %52 = arith.select %40, %48, %51 : vector<8x16xi1>, vector<8x16xf32>
    %53 = arith.subf %50, %52 : vector<8x16xf32>
    %cst_23 = arith.constant dense<0.000000e+00> : vector<8xf32>
    %54 = vector.multi_reduction <add>, %53, %cst_23 [1] : vector<8x16xf32> to vector<8xf32>
    %55 = vector.shape_cast %54 : vector<8xf32> to vector<8x1xf32>
    %56 = math.absf %55 : vector<8x1xf32>
    %57 = arith.addf %30, %56 : vector<8x1xf32>
    %cst_24 = arith.constant 5.000000e-01 : f32
    %58 = vector.broadcast %cst_24 : f32 to vector<8x16xf32>
    %59 = arith.cmpf oge, %12, %58 : vector<8x16xf32>
    %cst_25 = arith.constant 5.000000e-01 : f32
    %60 = vector.broadcast %cst_25 : f32 to vector<8x16xf32>
    %61 = arith.cmpf olt, %15, %60 : vector<8x16xf32>
    %62 = arith.andi %59, %61 : vector<8x16xi1>
    %cst_26 = arith.constant 5.000000e-01 : f32
    %63 = vector.broadcast %cst_26 : f32 to vector<8x16xf32>
    %64 = arith.cmpf oge, %21, %63 : vector<8x16xf32>
    %cst_27 = arith.constant 5.000000e-01 : f32
    %65 = vector.broadcast %cst_27 : f32 to vector<8x16xf32>
    %66 = arith.cmpf olt, %24, %65 : vector<8x16xf32>
    %67 = arith.andi %64, %66 : vector<8x16xi1>
    %cst_28 = arith.constant 5.000000e-01 : f32
    %68 = vector.broadcast %cst_28 : f32 to vector<8x16xf32>
    %69 = arith.subf %68, %12 : vector<8x16xf32>
    %70 = arith.mulf %69, %20 : vector<8x16xf32>
    %71 = arith.addf %10, %70 : vector<8x16xf32>
    %cst_29 = arith.constant 5.000000e-01 : f32
    %72 = vector.broadcast %cst_29 : f32 to vector<8x16xf32>
    %73 = arith.subf %72, %21 : vector<8x16xf32>
    %74 = arith.mulf %73, %29 : vector<8x16xf32>
    %75 = arith.addf %10, %74 : vector<8x16xf32>
    %cst_30 = arith.constant 0.000000e+00 : f32
    %76 = vector.broadcast %cst_30 : f32 to vector<8x16xf32>
    %77 = arith.select %62, %71, %76 : vector<8x16xi1>, vector<8x16xf32>
    %cst_31 = arith.constant 0.000000e+00 : f32
    %78 = vector.broadcast %cst_31 : f32 to vector<8x16xf32>
    %79 = arith.select %67, %75, %78 : vector<8x16xi1>, vector<8x16xf32>
    %80 = arith.subf %77, %79 : vector<8x16xf32>
    %cst_32 = arith.constant dense<0.000000e+00> : vector<8xf32>
    %81 = vector.multi_reduction <add>, %80, %cst_32 [1] : vector<8x16xf32> to vector<8xf32>
    %82 = vector.shape_cast %81 : vector<8xf32> to vector<8x1xf32>
    %83 = math.absf %82 : vector<8x1xf32>
    %84 = arith.addf %57, %83 : vector<8x1xf32>
    %cst_33 = arith.constant 7.500000e-01 : f32
    %85 = vector.broadcast %cst_33 : f32 to vector<8x16xf32>
    %86 = arith.cmpf oge, %12, %85 : vector<8x16xf32>
    %cst_34 = arith.constant 7.500000e-01 : f32
    %87 = vector.broadcast %cst_34 : f32 to vector<8x16xf32>
    %88 = arith.cmpf olt, %15, %87 : vector<8x16xf32>
    %89 = arith.andi %86, %88 : vector<8x16xi1>
    %cst_35 = arith.constant 7.500000e-01 : f32
    %90 = vector.broadcast %cst_35 : f32 to vector<8x16xf32>
    %91 = arith.cmpf oge, %21, %90 : vector<8x16xf32>
    %cst_36 = arith.constant 7.500000e-01 : f32
    %92 = vector.broadcast %cst_36 : f32 to vector<8x16xf32>
    %93 = arith.cmpf olt, %24, %92 : vector<8x16xf32>
    %94 = arith.andi %91, %93 : vector<8x16xi1>
    %cst_37 = arith.constant 7.500000e-01 : f32
    %95 = vector.broadcast %cst_37 : f32 to vector<8x16xf32>
    %96 = arith.subf %95, %12 : vector<8x16xf32>
    %97 = arith.mulf %96, %20 : vector<8x16xf32>
    %98 = arith.addf %10, %97 : vector<8x16xf32>
    %cst_38 = arith.constant 7.500000e-01 : f32
    %99 = vector.broadcast %cst_38 : f32 to vector<8x16xf32>
    %100 = arith.subf %99, %21 : vector<8x16xf32>
    %101 = arith.mulf %100, %29 : vector<8x16xf32>
    %102 = arith.addf %10, %101 : vector<8x16xf32>
    %cst_39 = arith.constant 0.000000e+00 : f32
    %103 = vector.broadcast %cst_39 : f32 to vector<8x16xf32>
    %104 = arith.select %89, %98, %103 : vector<8x16xi1>, vector<8x16xf32>
    %cst_40 = arith.constant 0.000000e+00 : f32
    %105 = vector.broadcast %cst_40 : f32 to vector<8x16xf32>
    %106 = arith.select %94, %102, %105 : vector<8x16xi1>, vector<8x16xf32>
    %107 = arith.subf %104, %106 : vector<8x16xf32>
    %cst_41 = arith.constant dense<0.000000e+00> : vector<8xf32>
    %108 = vector.multi_reduction <add>, %107, %cst_41 [1] : vector<8x16xf32> to vector<8xf32>
    %109 = vector.shape_cast %108 : vector<8xf32> to vector<8x1xf32>
    %110 = math.absf %109 : vector<8x1xf32>
    %111 = arith.addf %84, %110 : vector<8x1xf32>
    %c0_42 = arith.constant 0 : index
    %c0_43 = arith.constant 0 : index
    %112 = vector.load %arg3[%c0_42, %c0_43] : memref<1x1xf32, #tpu.memory_space<vmem>>, vector<1x1xf32>
    %cst_44 = arith.constant dense<0.000000e+00> : vector<1xf32>
    %113 = vector.multi_reduction <add>, %111, %cst_44 [0] : vector<8x1xf32> to vector<1xf32>
    %114 = vector.shape_cast %113 : vector<1xf32> to vector<1x1xf32>
    %115 = arith.addf %112, %114 : vector<1x1xf32>
    %c0_45 = arith.constant 0 : index
    %c0_46 = arith.constant 0 : index
    %116 = vector.load %arg3[%c0_45, %c0_46] : memref<1x1xf32, #tpu.memory_space<vmem>>, vector<1x1xf32>
    tpu.vector_store %arg3[%c0_45, %c0_46], %115 {strides = array<i32>} : memref<1x1xf32, #tpu.memory_space<vmem>>, vector<1x1xf32>,
    return
  }
  func.func @transform_0(%arg0: i32) -> (i32, i32) {
    %c0_i32 = arith.constant 0 : i32
    %c0_i32_0 = arith.constant 0 : i32
    return %arg0, %c0_i32 : i32, i32
  }
  func.func @transform_1(%arg0: i32) -> (i32, i32) {
    %c0_i32 = arith.constant 0 : i32
    %c0_i32_0 = arith.constant 0 : i32
    return %arg0, %c0_i32 : i32, i32
  }
  func.func @transform_2(%arg0: i32) -> (i32, i32) {
    %c0_i32 = arith.constant 0 : i32
    %c0_i32_0 = arith.constant 0 : i32
    %c0_i32_1 = arith.constant 0 : i32
    return %c0_i32, %c0_i32_0 : i32, i32
  }
}

</mosaic_0001>

<llo_original>
// kernel: tpu_custom_call.1
$region0: #{tpu_custom_call.1}
  #allocation0 [shape = 'u32[]', space=smem, size = 0x4, offset = 0x4, fixed_abs, tag = 'smem constant byte address 0x4 - core index']
  #allocation1 [shape = 'u32[144,128]{1,0:T(1,128)}', space=vmem, size = 0x12000, scoped, tag = 'internal scratch']
  #allocation2 [shape = 'f32[16,16]{1,0:T(8,128)}', space=vmem, size = 0x2000, scoped, tag = 'scratch operand']
  %s0 = inlined_call_operand.hbm [shape: f32[8,16], index: 0, kind: input, shape index: {}]
  %s1 = inlined_call_operand.hbm [shape: f32[8,16], index: 1, kind: input, shape index: {}]
  %s2 = inlined_call_operand.hbm [shape: f32[1,1], index: 2, kind: output, shape index: {}]
  %s3 = sld [smem:[#allocation0]]
  $region30: #{tpu_custom_call.1} parent=0
    _
  %s5 = ssub.s32 1, %s3
  %s6 = scalar_select 0, %s5, %s3
  $region1: #{tpu_custom_call.1} parent=0
    #allocation3 [shape = 'u8[4096]{0}', space=vmem, size = 0x1000, scoped, tag = 'input window, operand 0, single buffered']
    #allocation4 [shape = 's32[1]{0}', space=sflag, size = 0x4, scoped, tag = 'scoped memory for tpu_custom_call.1']
    #allocation5 [shape = 's32[1]{0}', space=sflag, size = 0x4, scoped, tag = 'scoped memory for tpu_custom_call.1']
    #allocation6 [shape = 'u8[4096]{0}', space=vmem, size = 0x1000, scoped, tag = 'input window, operand 1, single buffered']
    #allocation7 [shape = 's32[1]{0}', space=sflag, size = 0x4, scoped, tag = 'scoped memory for tpu_custom_call.1']
    #allocation8 [shape = 'u8[512]{0}', space=vmem, size = 0x400, scoped, tag = 'output window, operand 0, single buffered']
    %7 = vsyncpa [#allocation4], 0
    %8 = vsyncpa [#allocation7], 0
    %9 = vsyncpa [#allocation5], 0
    // Predicated region
    $region2: #{tpu_custom_call.1} parent=1 // pred_check
      _
    $region3: #{tpu_custom_call.1} parent=1 // pred_check_branch
      %11 = sbr.rel (0) target = $region5
    $region4: #{tpu_custom_call.1} parent=1 // pred_region
      %s13 = ssub.s32 128, 128
      %14 = vsyncadd [#allocation4], %s13
      %s16 = sshll.u32 [#allocation3], 4
      %s17 = int_to_ptr.vmem [resolvable:$true] %s16
      %19 = dma.hbm_to_vmem [thread:$0]  %s0, 128, %s17, [#allocation4]
    $region5: #{tpu_custom_call.1} parent=1 // pred_fallthru
      _
    // Predicated region
    $region6: #{tpu_custom_call.1} parent=1 // pred_check
      _
    $region7: #{tpu_custom_call.1} parent=1 // pred_check_branch
      %21 = sbr.rel (0) target = $region9
    $region8: #{tpu_custom_call.1} parent=1 // pred_region
      %s23 = ssub.s32 128, 128
      %24 = vsyncadd [#allocation7], %s23
      %s26 = sshll.u32 [#allocation6], 4
      %s27 = int_to_ptr.vmem [resolvable:$true] %s26
      %29 = dma.hbm_to_vmem [thread:$0]  %s1, 128, %s27, [#allocation7]
    $region9: #{tpu_custom_call.1} parent=1 // pred_fallthru
      _
    // Predicated region
    $region10: #{tpu_custom_call.1} parent=1 // pred_check
      _
    $region11: #{tpu_custom_call.1} parent=1 // pred_check_branch
      %31 = sbr.rel (0) target = $region13
    $region12: #{tpu_custom_call.1} parent=1 // pred_region
      %32 = dma.done [#allocation4], 128
    $region13: #{tpu_custom_call.1} parent=1 // pred_fallthru
      _
    // Predicated region
    $region14: #{tpu_custom_call.1} parent=1 // pred_check
      _
    $region15: #{tpu_custom_call.1} parent=1 // pred_check_branch
      %34 = sbr.rel (0) target = $region17
    $region16: #{tpu_custom_call.1} parent=1 // pred_region
      %35 = dma.done [#allocation7], 128
    $region17: #{tpu_custom_call.1} parent=1 // pred_fallthru
      _
    %p36 = scmp.eq.s32.totalorder 0, 0
    // Predicated region
    $region18: #{tpu_custom_call.1} parent=1 // pred_check
      %p37 = pneg %p36
    $region19: #{tpu_custom_call.1} parent=1 // pred_check_branch
      %39 = sbr.rel (%p37) target = $region21
    $region20: #{tpu_custom_call.1} parent=1 // pred_region
      %vm40 = vcmask 0
      %41 = vst.msk [vmem:[#allocation8] sm:$0x1] %vm40, 0.0
      %v42 = vlaneseq
      %v43 = vshrl.u32 %v42, 7
      %v44 = vadd.s32 %v43, 8
      %v45 = vlaneseq
      %v46 = vand.u32 %v45, 127
      %vm47 = vcmp.le.s32.totalorder %v43, %v46
      %vm48 = vcmp.le.s32.totalorder %v44, %v46
      %v49 = vsel %vm47, 1, 0
      %v50 = vsel %vm48, 1, 0
      %v51 = vcvt.s32.f32 %v49
      %v52 = vcvt.s32.f32 %v50
      %vm53 = vcmask 130048
      %54 = vst.msk [vmem:[#allocation2] sm:$0xff] %vm53, %v51
      %55 = vst.msk [vmem:[#allocation2 + $0x8] sm:$0xff] %vm53, %v52
    $region21: #{tpu_custom_call.1} parent=1 // pred_fallthru
      _
    %v56 = vld [vmem:[#allocation3] sm:$0xff]
    %v57 = vld [vmem:[#allocation6] sm:$0xff]
    %v58 = vlaneseq
    %v59 = vand.u32 %v58, 127
    %vm60 = vcmp.eq.s32.totalorder %v59, 0
    %v61 = vadd.s32 %v59, 1
    %v62 = vcvt.s32.f32 %v61
    %v63 = vld [vmem:[#allocation2] sm:$0xff]
    %v64 = vld [vmem:[#allocation2 + $0x8] sm:$0xff]
    %vm65 = vcmask 130048
    %v67 = vsel %vm65, %v57, 0
    %69 = vmatprep.subr.mxu0 0.0
    %70 = vmatpush1.msra.mxu0 %v63
    %71 = vmatprep.subr.mxu0 0.0
    %72 = vmatpush1.msra.mxu0 %v64
    %73 = vmatprep.subr.mxu0 0.0
    %74 = vmatpush1.msra.mxu0 0.0
    %75 = vmatprep.subr.mxu0 0.0
    %76 = vmatpush1.msra.mxu0 0.0
    %77 = vmatprep.subr.mxu0 0.0
    %78 = vmatpush1.msra.mxu0 0.0
    %79 = vmatprep.subr.mxu0 0.0
    %80 = vmatpush1.msra.mxu0 0.0
    %81 = vmatprep.subr.mxu0 0.0
    %82 = vmatpush1.msra.mxu0 0.0
    %83 = vmatprep.subr.mxu0 0.0
    %84 = vmatpush1.msra.mxu0 0.0
    %85 = vmatprep.subr.mxu0 0.0
    %86 = vmatpush1.msra.mxu0 0.0
    %87 = vmatprep.subr.mxu0 0.0
    %88 = vmatpush1.msra.mxu0 0.0
    %89 = vmatprep.subr.mxu0 0.0
    %90 = vmatpush1.msra.mxu0 0.0
    %91 = vmatprep.subr.mxu0 0.0
    %92 = vmatpush1.msra.mxu0 0.0
    %93 = vmatprep.subr.mxu0 0.0
    %94 = vmatpush1.msra.mxu0 0.0
    %95 = vmatprep.subr.mxu0 0.0
    %96 = vmatpush1.msra.mxu0 0.0
    %97 = vmatprep.subr.mxu0 0.0
    %98 = vmatpush1.msra.mxu0 0.0
    %99 = vmatprep.subr.mxu0 0.0
    %100 = vmatpush1.msra.mxu0 0.0
    %101 = vmatprep.subr.mxu0 0.0
    %102 = vmatpush1.msra.mxu0 0.0
    %103 = vmatprep.subr.mxu0 0.0
    %104 = vmatpush1.msra.mxu0 0.0
    %105 = vmatprep.subr.mxu0 0.0
    %106 = vmatpush1.msra.mxu0 0.0
    %107 = vmatprep.subr.mxu0 0.0
    %108 = vmatpush1.msra.mxu0 0.0
    %109 = vmatprep.subr.mxu0 0.0
    %110 = vmatpush1.msra.mxu0 0.0
    %111 = vmatprep.subr.mxu0 0.0
    %112 = vmatpush1.msra.mxu0 0.0
    %113 = vmatprep.subr.mxu0 0.0
    %114 = vmatpush1.msra.mxu0 0.0
    %115 = vmatprep.subr.mxu0 0.0
    %116 = vmatpush1.msra.mxu0 0.0
    %117 = vmatprep.subr.mxu0 0.0
    %118 = vmatpush1.msra.mxu0 0.0
    %119 = vmatprep.subr.mxu0 0.0
    %120 = vmatpush1.msra.mxu0 0.0
    %121 = vmatprep.subr.mxu0 0.0
    %122 = vmatpush1.msra.mxu0 0.0
    %123 = vmatprep.subr.mxu0 0.0
    %124 = vmatpush1.msra.mxu0 0.0
    %125 = vmatprep.subr.mxu0 0.0
    %126 = vmatpush1.msra.mxu0 0.0
    %127 = vmatprep.subr.mxu0 0.0
    %128 = vmatpush1.msra.mxu0 0.0
    %129 = vmatprep.subr.mxu0 0.0
    %130 = vmatpush1.msra.mxu0 0.0
    %131 = vmatprep.subr.mxu0 0.0
    %132 = vmatpush1.msra.mxu0 0.0
    %133 = vmatprep.mubr.f32.mxu0 0.0
    %134 = vmatmul.mubr.f32.gmra.mrb[0].mxu0 %v67
    %v135 = vpop.f32.mrb[0].mxu0
    %v136 = vadd.f32 0.0, %v135
    %v137 = vpop.f32.mrb[0].mxu0
    %138 = vdwg.mxu0
    %v139 = vsub.f32 %v136, %v57
    %v140 = vsel %vm60, -1.0, %v139
    %vm141 = vcmp.gt.f32.partialorder %v57, 0.0
    %v142 = vsel %vm141, %v57, 1.0
    %v143 = vrcp.pop %v142
    %v145 = vsel %vm65, %v56, 0
    %147 = vmatprep.subr.mxu0 0.0
    %148 = vmatpush1.msra.mxu0 %v63
    %149 = vmatprep.subr.mxu0 0.0
    %150 = vmatpush1.msra.mxu0 %v64
    %151 = vmatprep.subr.mxu0 0.0
    %152 = vmatpush1.msra.mxu0 0.0
    %153 = vmatprep.subr.mxu0 0.0
    %154 = vmatpush1.msra.mxu0 0.0
    %155 = vmatprep.subr.mxu0 0.0
    %156 = vmatpush1.msra.mxu0 0.0
    %157 = vmatprep.subr.mxu0 0.0
    %158 = vmatpush1.msra.mxu0 0.0
    %159 = vmatprep.subr.mxu0 0.0
    %160 = vmatpush1.msra.mxu0 0.0
    %161 = vmatprep.subr.mxu0 0.0
    %162 = vmatpush1.msra.mxu0 0.0
    %163 = vmatprep.subr.mxu0 0.0
    %164 = vmatpush1.msra.mxu0 0.0
    %165 = vmatprep.subr.mxu0 0.0
    %166 = vmatpush1.msra.mxu0 0.0
    %167 = vmatprep.subr.mxu0 0.0
    %168 = vmatpush1.msra.mxu0 0.0
    %169 = vmatprep.subr.mxu0 0.0
    %170 = vmatpush1.msra.mxu0 0.0
    %171 = vmatprep.subr.mxu0 0.0
    %172 = vmatpush1.msra.mxu0 0.0
    %173 = vmatprep.subr.mxu0 0.0
    %174 = vmatpush1.msra.mxu0 0.0
    %175 = vmatprep.subr.mxu0 0.0
    %176 = vmatpush1.msra.mxu0 0.0
    %177 = vmatprep.subr.mxu0 0.0
    %178 = vmatpush1.msra.mxu0 0.0
    %179 = vmatprep.subr.mxu0 0.0
    %180 = vmatpush1.msra.mxu0 0.0
    %181 = vmatprep.subr.mxu0 0.0
    %182 = vmatpush1.msra.mxu0 0.0
    %183 = vmatprep.subr.mxu0 0.0
    %184 = vmatpush1.msra.mxu0 0.0
    %185 = vmatprep.subr.mxu0 0.0
    %186 = vmatpush1.msra.mxu0 0.0
    %187 = vmatprep.subr.mxu0 0.0
    %188 = vmatpush1.msra.mxu0 0.0
    %189 = vmatprep.subr.mxu0 0.0
    %190 = vmatpush1.msra.mxu0 0.0
    %191 = vmatprep.subr.mxu0 0.0
    %192 = vmatpush1.msra.mxu0 0.0
    %193 = vmatprep.subr.mxu0 0.0
    %194 = vmatpush1.msra.mxu0 0.0
    %195 = vmatprep.subr.mxu0 0.0
    %196 = vmatpush1.msra.mxu0 0.0
    %197 = vmatprep.subr.mxu0 0.0
    %198 = vmatpush1.msra.mxu0 0.0
    %199 = vmatprep.subr.mxu0 0.0
    %200 = vmatpush1.msra.mxu0 0.0
    %201 = vmatprep.subr.mxu0 0.0
    %202 = vmatpush1.msra.mxu0 0.0
    %203 = vmatprep.subr.mxu0 0.0
    %204 = vmatpush1.msra.mxu0 0.0
    %205 = vmatprep.subr.mxu0 0.0
    %206 = vmatpush1.msra.mxu0 0.0
    %207 = vmatprep.subr.mxu0 0.0
    %208 = vmatpush1.msra.mxu0 0.0
    %209 = vmatprep.subr.mxu0 0.0
    %210 = vmatpush1.msra.mxu0 0.0
    %211 = vmatprep.mubr.f32.mxu0 0.0
    %212 = vmatmul.mubr.f32.gmra.mrb[0].mxu0 %v145
    %v213 = vpop.f32.mrb[0].mxu0
    %v214 = vadd.f32 0.0, %v213
    %v215 = vpop.f32.mrb[0].mxu0
    %216 = vdwg.mxu0
    %v217 = vsub.f32 %v214, %v56
    %v218 = vsel %vm60, -1.0, %v217
    %vm219 = vcmp.gt.f32.partialorder %v56, 0.0
    %v220 = vsel %vm219, %v56, 1.0
    %v221 = vrcp.pop %v220
    %vm222 = vcmp.ge.f32.partialorder %v136, 0.25
    %vm223 = vcmp.lt.f32.partialorder %v140, 0.25
    %vm224 = vmand %vm222, %vm223
    %vm225 = vcmp.ge.f32.partialorder %v214, 0.25
    %vm226 = vcmp.lt.f32.partialorder %v218, 0.25
    %vm227 = vmand %vm225, %vm226
    %v228 = vsub.f32 0.25, %v136
    %v229 = vmul.f32 %v228, %v143
    %v230 = vadd.f32 %v62, %v229
    %v231 = vsub.f32 0.25, %v214
    %v232 = vmul.f32 %v231, %v221
    %v233 = vadd.f32 %v62, %v232
    %v234 = vsel %vm224, %v230, 0.0
    %v235 = vsel %vm227, %v233, 0.0
    %v236 = vsub.f32 %v234, %v235
    %v237 = vsel %vm65, %v236, 0.0
    %238 = vadd.xlane.f32.xlu0 %v237
    %v239 = vpop.xlane.xlu0 %238
    %v240 = vand.u32 2147483647, %v239
    %v241 = vadd.f32 %v240, 0.0
    %vm242 = vcmp.ge.f32.partialorder %v136, 0.5
    %vm243 = vcmp.lt.f32.partialorder %v140, 0.5
    %vm244 = vmand %vm242, %vm243
    %vm245 = vcmp.ge.f32.partialorder %v214, 0.5
    %vm246 = vcmp.lt.f32.partialorder %v218, 0.5
    %vm247 = vmand %vm245, %vm246
    %v248 = vsub.f32 0.5, %v136
    %v249 = vmul.f32 %v248, %v143
    %v250 = vadd.f32 %v62, %v249
    %v251 = vsub.f32 0.5, %v214
    %v252 = vmul.f32 %v251, %v221
    %v253 = vadd.f32 %v62, %v252
    %v254 = vsel %vm244, %v250, 0.0
    %v255 = vsel %vm247, %v253, 0.0
    %v256 = vsub.f32 %v254, %v255
    %v257 = vsel %vm65, %v256, 0.0
    %258 = vadd.xlane.f32.xlu0 %v257
    %v259 = vpop.xlane.xlu0 %258
    %v260 = vand.u32 2147483647, %v259
    %v261 = vadd.f32 %v241, %v260
    %vm262 = vcmp.ge.f32.partialorder %v136, 0.75
    %vm263 = vcmp.lt.f32.partialorder %v140, 0.75
    %vm264 = vmand %vm262, %vm263
    %vm265 = vcmp.ge.f32.partialorder %v214, 0.75
    %vm266 = vcmp.lt.f32.partialorder %v218, 0.75
    %vm267 = vmand %vm265, %vm266
    %v268 = vsub.f32 0.75, %v136
    %v269 = vmul.f32 %v268, %v143
    %v270 = vadd.f32 %v62, %v269
    %v271 = vsub.f32 0.75, %v214
    %v272 = vmul.f32 %v271, %v221
    %v273 = vadd.f32 %v62, %v272
    %v274 = vsel %vm264, %v270, 0.0
    %v275 = vsel %vm267, %v273, 0.0
    %v276 = vsub.f32 %v274, %v275
    %v277 = vsel %vm65, %v276, 0.0
    %278 = vadd.xlane.f32.xlu0 %v277
    %v279 = vpop.xlane.xlu0 %278
    %v280 = vand.u32 2147483647, %v279
    %v281 = vadd.f32 %v261, %v280
    %v282 = vld [vmem:[#allocation8] sm:$0x1]
    %v283 = vrot.slane %v281, 4
    %v284 = vadd.f32 %v281, %v283
    %v285 = vrot.slane %v284, 2
    %v286 = vadd.f32 %v284, %v285
    %v287 = vrot.slane %v286, 1
    %v288 = vadd.f32 %v286, %v287
    %v289 = vadd.f32 %v282, %v288
    %vm290 = vcmask 0
    %291 = vst.msk [vmem:[#allocation8] sm:$0x1] %vm290, %v289
    // Predicated region
    $region22: #{tpu_custom_call.1} parent=1 // pred_check
      _
    $region23: #{tpu_custom_call.1} parent=1 // pred_check_branch
      %293 = sbr.rel (0) target = $region25
    $region24: #{tpu_custom_call.1} parent=1 // pred_region
      %s295 = ssub.s32 16, 16
      %296 = vsyncadd [#allocation5], %s295
      %s298 = sshll.u32 [#allocation8], 4
      %s299 = int_to_ptr.vmem [resolvable:$true] %s298
      %301 = dma.vmem_to_hbm [thread:$0]  %s299, 16, %s2, [#allocation5]
    $region25: #{tpu_custom_call.1} parent=1 // pred_fallthru
      _
    // Predicated region
    $region26: #{tpu_custom_call.1} parent=1 // pred_check
      _
    $region27: #{tpu_custom_call.1} parent=1 // pred_check_branch
      %303 = sbr.rel (0) target = $region29
    $region28: #{tpu_custom_call.1} parent=1 // pred_region
      %304 = dma.done [#allocation5], 16
    $region29: #{tpu_custom_call.1} parent=1 // pred_fallthru
      _
    %305 = vsyncpa [#allocation4], 1
    %306 = vsyncpa [#allocation7], 1
    %307 = vsyncpa [#allocation5], 1

</llo_original>
